<compile_context>
chip_gen: v7x
topology: tpu7x:2x2x1
jax: 0.10.0
libtpu: 0.0.40
codegen_flags: <defaults>
</compile_context>

<pallas_src>
import functools

import jax
import jax.numpy as jnp
from jax import lax
from jax.experimental import pallas as pl
from jax.experimental.pallas import tpu as pltpu


def _round_up(x, m):
    return ((x + m - 1) // m) * m


def _pick_tile(n, max_tile):
    """Choose the pairwise tile size.

    Constraints: tile is a multiple of 8; when the padded batch needs more
    than one block, tile must also be a multiple of 128 (it is the lane dim of
    the (1, tile) label / squared-norm column blocks).  Primary objective is
    minimal quadratic padding waste, then prefer >= 2 row blocks (megacore
    sharding on v7x), then the largest tile (fewest grid steps / emb re-streams).
    """
    n8 = _round_up(n, 8)
    if n8 <= min(256, max_tile):
        return n8                       # tiny batch: one block covers it all
    cands = list(range(128, max(max_tile, 128) + 1, 128))
    if n8 <= max_tile:
        cands.append(n8)                # single-block option (near-zero padding)

    def key(t):
        n_pad = _round_up(n, t)
        ni = n_pad // t
        return (n_pad, 0 if ni >= 2 else 1, -t)

    return min(cands, key=key)


def _pe_loss_kernel(alpha_ref, emb_r_ref, emb_c_ref, sq_r_ref, sq_c_ref,
                    lab_r_ref, lab_c_ref, invcnt_ref, preds_ref,
                    out_ref, inv_sum_ref, *, n_valid):
    i = pl.program_id(0)
    j = pl.program_id(1)
    nj = pl.num_programs(1)
    tr = emb_r_ref.shape[0]
    tc = emb_c_ref.shape[0]

    @pl.when(j == 0)
    def _init():
        inv_sum_ref[...] = jnp.zeros_like(inv_sum_ref)

    # The pairwise matrix is symmetric and count_i == count_j for same-class
    # pairs, so only upper-triangle blocks are computed: strictly-upper blocks
    # count double, the diagonal block excludes self-pairs locally.
    @pl.when(j >= i)
    def _compute():
        # Gram tile on the MXU in the inputs' native dtype, f32 accumulation.
        gram = lax.dot_general(emb_r_ref[...], emb_c_ref[...],
                               (((1,), (1,)), ((), ())),
                               preferred_element_type=jnp.float32)    # (tr, tc)
        d2 = jnp.maximum(sq_r_ref[...] + sq_c_ref[...] - 2.0 * gram, 0.0)

        same = lab_r_ref[...] == lab_c_ref[...]                       # (tr, tc)
        # Single EUP rsqrt pass over a pre-masked d2; non-pairs contribute 0.
        inv = lax.rsqrt(jnp.where(same, d2, 1.0)) * same.astype(jnp.float32)

        @pl.when(j > i)
        def _upper():
            inv_sum_ref[...] += 2.0 * jnp.sum(inv, axis=1, keepdims=True)

        @pl.when(j == i)
        def _diag():
            rr = lax.broadcasted_iota(jnp.int32, (tr, tc), 0)
            cc = lax.broadcasted_iota(jnp.int32, (tr, tc), 1)
            off_diag = jnp.where(rr == cc, 0.0, inv)
            inv_sum_ref[...] += jnp.sum(off_diag, axis=1, keepdims=True)

    @pl.when(j == nj - 1)
    def _finalize():
        # PE partial for this row block: row sums weighted by the precomputed
        # 1/class_count (padded rows carry 0, so they contribute nothing).
        pe_part = jnp.sum(inv_sum_ref[...] * invcnt_ref[...])

        # Cross entropy, summed here and divided by the real batch size.
        preds = preds_ref[...]                                        # (tr, Cp) f32
        m = jnp.max(preds, axis=1, keepdims=True)
        lse = m + jnp.log(jnp.sum(jnp.exp(preds - m), axis=1, keepdims=True))
        cls = lax.broadcasted_iota(jnp.int32, preds.shape, 1)
        onehot = (cls == lab_r_ref[...]).astype(jnp.float32)
        picked = jnp.sum(preds * onehot, axis=1, keepdims=True)
        valid = (lab_r_ref[...] >= 0).astype(jnp.float32)             # mask padding
        ce_part = jnp.sum((lse - picked) * valid) / jnp.float32(n_valid)

        val = alpha_ref[0, 0] * pe_part + ce_part
        rr = lax.broadcasted_iota(jnp.int32, out_ref.shape, 0)
        cc = lax.broadcasted_iota(jnp.int32, out_ref.shape, 1)
        out_ref[...] = jnp.where(jnp.logical_and(rr == 0, cc == 0), val, 0.0)


def pe_loss_pallas(embeddings, preds, labels, *, alpha=2.0, use_angular=False,
                   max_tile=512):
    """PELoss forward. embeddings: (N, D), preds: (N, C) logits, labels: (N,) int."""
    if use_angular:
        # TODO(synk): angular-distance variant not implemented.
        raise NotImplementedError("use_angular=True not implemented in Pallas kernel")
    if isinstance(embeddings, (list, tuple)):
        embeddings = embeddings[0]

    emb = jnp.asarray(embeddings)
    lg = jnp.asarray(preds).astype(jnp.float32)
    lab = jnp.asarray(labels).astype(jnp.int32)

    n, d = emb.shape
    c = lg.shape[1]

    # O(N) precompute outside the kernel: squared norms and 1/class_count.
    emb32 = emb.astype(jnp.float32)
    sq = jnp.sum(emb32 * emb32, axis=1)                               # (N,)
    class_sizes = jnp.zeros((c,), jnp.float32).at[lab].add(1.0)       # (C,)
    inv_cnt = 1.0 / class_sizes[lab]                                  # (N,)

    tile = _pick_tile(n, max_tile)
    n_pad = _round_up(n, tile)
    c_pad = _round_up(c, 128)

    if c_pad > c:
        # Pad logit lanes with a huge negative so they never affect the LSE.
        lg = jnp.pad(lg, ((0, 0), (0, c_pad - c)), constant_values=-1e30)
    if n_pad > n:
        pad = n_pad - n
        emb = jnp.pad(emb, ((0, pad), (0, 0)))
        sq = jnp.pad(sq, (0, pad))
        inv_cnt = jnp.pad(inv_cnt, (0, pad))
        lg = jnp.pad(lg, ((0, pad), (0, 0)))
        # Unique negative labels: padded rows never pair with anything and are
        # excluded from the CE mean by the `label >= 0` mask.
        lab = jnp.concatenate([lab, -1 - jnp.arange(pad, dtype=jnp.int32)])

    sq_row = sq.reshape(n_pad, 1)
    sq_col = sq.reshape(1, n_pad)
    lab_row = lab.reshape(n_pad, 1)
    lab_col = lab.reshape(1, n_pad)
    invcnt_row = inv_cnt.reshape(n_pad, 1)
    alpha_arr = jnp.full((1, 1), alpha, dtype=jnp.float32)

    ni = n_pad // tile
    nb_ut = ni * (ni + 1) // 2          # upper-triangle blocks actually computed
    itemsize = emb.dtype.itemsize
    cost = pl.CostEstimate(
        flops=nb_ut * tile * tile * (2 * d + 8) + 6 * n_pad * c_pad,
        transcendentals=nb_ut * tile * tile + n_pad * c_pad,
        bytes_accessed=(ni + 1) * n_pad * d * itemsize + n_pad * c_pad * 4
        + 4 * n_pad * 4 + ni * 8 * 128 * 4,
    )

    kernel = functools.partial(_pe_loss_kernel, n_valid=n)

    out = pl.pallas_call(
        kernel,
        out_shape=jax.ShapeDtypeStruct((ni * 8, 128), jnp.float32),
        grid=(ni, ni),
        in_specs=[
            pl.BlockSpec((1, 1), lambda i, j: (0, 0),
                         memory_space=pltpu.MemorySpace.SMEM),        # alpha
            pl.BlockSpec((tile, d), lambda i, j: (i, 0)),             # emb rows
            pl.BlockSpec((tile, d), lambda i, j: (j, 0)),             # emb cols
            pl.BlockSpec((tile, 1), lambda i, j: (i, 0)),             # |e|^2 rows
            pl.BlockSpec((1, tile), lambda i, j: (0, j)),             # |e|^2 cols
            pl.BlockSpec((tile, 1), lambda i, j: (i, 0)),             # labels rows
            pl.BlockSpec((1, tile), lambda i, j: (0, j)),             # labels cols
            pl.BlockSpec((tile, 1), lambda i, j: (i, 0)),             # 1/class count
            pl.BlockSpec((tile, c_pad), lambda i, j: (i, 0)),         # preds rows
        ],
        out_specs=pl.BlockSpec((8, 128), lambda i, j: (i, 0)),
        scratch_shapes=[pltpu.VMEM((tile, 1), jnp.float32)],          # row 1/d sums
        compiler_params=pltpu.CompilerParams(
            dimension_semantics=("parallel", "arbitrary"),
            vmem_limit_bytes=32 * 1024 * 1024),
        cost_estimate=cost,
    )(alpha_arr, emb, emb, sq_row, sq_col, lab_row, lab_col, invcnt_row, lg)

    return jnp.sum(out)


def pe_loss_ref(embeddings, preds, labels, *, alpha=2.0):
    """Pure-JAX reference mirroring the PyTorch forward (use_angular=False)."""
    emb = embeddings.astype(jnp.float32)
    n = emb.shape[0]
    diff = emb[:, None, :] - emb[None, :, :]
    dist = jnp.sqrt(jnp.maximum(jnp.sum(diff * diff, axis=-1), 0.0))
    same = labels[:, None] == labels[None, :]
    off = ~jnp.eye(n, dtype=bool)
    mask = same & off
    counts = jnp.sum(same.astype(jnp.float32), axis=1, keepdims=True)
    pe = jnp.sum(jnp.where(mask, 1.0 / dist, 0.0) / counts)

    lse = jax.nn.logsumexp(preds.astype(jnp.float32), axis=-1)
    picked = jnp.take_along_axis(
        preds.astype(jnp.float32), labels[:, None].astype(jnp.int32), axis=-1
    )[:, 0]
    ce = jnp.mean(lse - picked)
    return alpha * pe + ce


if __name__ == "__main__":
    key = jax.random.PRNGKey(0)
    k1, k2, k3, k4, k5, k6 = jax.random.split(key, 6)

    # Small single-block case (matches the module's toy sizes).
    N, D, C = 8, 32, 4
    embeddings = jax.random.normal(k1, (N, D), dtype=jnp.float32)
    preds = jax.random.normal(k2, (N, C), dtype=jnp.float32)
    labels = jax.random.randint(k3, (N,), 0, C, dtype=jnp.int32)

    out = jax.block_until_ready(pe_loss_pallas(embeddings, preds, labels, alpha=2.0))
    ref = jax.block_until_ready(pe_loss_ref(embeddings, preds, labels, alpha=2.0))
    assert jnp.allclose(out, ref, rtol=1e-3, atol=1e-3), (out, ref)

    # Medium case: adaptive tiling picks a single 304-row block (minimal padding,
    # no more N=300 -> 512 quadratic blow-up).
    N2, D2, C2 = 300, 32, 4
    emb2 = jax.random.normal(k4, (N2, D2), dtype=jnp.float32)
    preds2 = jax.random.normal(k5, (N2, C2), dtype=jnp.float32)
    labels2 = jax.random.randint(k6, (N2,), 0, C2, dtype=jnp.int32)

    out2 = jax.block_until_ready(pe_loss_pallas(emb2, preds2, labels2, alpha=2.0))
    ref2 = jax.block_until_ready(pe_loss_ref(emb2, preds2, labels2, alpha=2.0))
    assert jnp.allclose(out2, ref2, rtol=5e-3, atol=5e-3), (out2, ref2)

    # Same data with max_tile=128 to exercise the multi-block upper-triangle
    # grid, padded rows and the per-row accumulator across column blocks.
    out3 = jax.block_until_ready(
        pe_loss_pallas(emb2, preds2, labels2, alpha=2.0, max_tile=128))
    assert jnp.allclose(out3, ref2, rtol=5e-3, atol=5e-3), (out3, ref2)

    print("KERNEL_OK")
</pallas_src>

<mosaic_0001>
module attributes {stable_mosaic.version = 11 : i64} {
  func.func @_pe_loss_kernel(%arg0: i32, %arg1: i32, %arg2: memref<1x1xf32, #tpu.memory_space<smem>>, %arg3: memref<8x32xf32, #tpu.memory_space<vmem>>, %arg4: memref<8x32xf32, #tpu.memory_space<vmem>>, %arg5: memref<8x1xf32, #tpu.memory_space<vmem>>, %arg6: memref<1x8xf32, #tpu.memory_space<vmem>>, %arg7: memref<8x1xi32, #tpu.memory_space<vmem>>, %arg8: memref<1x8xi32, #tpu.memory_space<vmem>>, %arg9: memref<8x1xf32, #tpu.memory_space<vmem>>, %arg10: memref<8x128xf32, #tpu.memory_space<vmem>>, %arg11: memref<8x128xf32, #tpu.memory_space<vmem>>, %arg12: memref<8x1xf32, #tpu.memory_space<vmem>>) attributes {dimension_semantics = [#tpu.dimension_semantics<parallel>, #tpu.dimension_semantics<arbitrary>], iteration_bounds = array<i64: 1, 1>, scalar_prefetch = 0 : i64, scratch_operands = 1 : i64, tpu.core_type = #tpu.core_type<tc>, window_params = [{transform_indices = @transform_0, window_bounds = array<i64: 1, 1>}, {transform_indices = @transform_1, window_bounds = array<i64: 8, 32>}, {transform_indices = @transform_2, window_bounds = array<i64: 8, 32>}, {transform_indices = @transform_3, window_bounds = array<i64: 8, 1>}, {transform_indices = @transform_4, window_bounds = array<i64: 1, 8>}, {transform_indices = @transform_5, window_bounds = array<i64: 8, 1>}, {transform_indices = @transform_6, window_bounds = array<i64: 1, 8>}, {transform_indices = @transform_7, window_bounds = array<i64: 8, 1>}, {transform_indices = @transform_8, window_bounds = array<i64: 8, 128>}, {transform_indices = @transform_9, window_bounds = array<i64: 8, 128>}]} {
    %c0_i32 = arith.constant 0 : i32
    %0 = arith.cmpi eq, %arg1, %c0_i32 : i32
    %1 = arith.extui %0 : i1 to i32
    %c0_i32_0 = arith.constant 0 : i32
    %2 = arith.cmpi ne, %1, %c0_i32_0 : i32
    scf.if %2 {
      %cst = arith.constant 0.000000e+00 : f32
      %9 = vector.broadcast %cst : f32 to vector<8x1xf32>
      %c0 = arith.constant 0 : index
      %c0_4 = arith.constant 0 : index
      %10 = vector.load %arg12[%c0, %c0_4] : memref<8x1xf32, #tpu.memory_space<vmem>>, vector<8x1xf32>
      tpu.vector_store %arg12[%c0, %c0_4], %9 {strides = array<i32>} : memref<8x1xf32, #tpu.memory_space<vmem>>, vector<8x1xf32>,
    } else {
    }
    %3 = arith.cmpi sge, %arg1, %arg0 : i32
    %4 = arith.extui %3 : i1 to i32
    %c0_i32_1 = arith.constant 0 : i32
    %5 = arith.cmpi ne, %4, %c0_i32_1 : i32
    scf.if %5 {
      %c0 = arith.constant 0 : index
      %c0_4 = arith.constant 0 : index
      %9 = vector.load %arg3[%c0, %c0_4] : memref<8x32xf32, #tpu.memory_space<vmem>>, vector<8x32xf32>
      %c0_5 = arith.constant 0 : index
      %c0_6 = arith.constant 0 : index
      %10 = vector.load %arg4[%c0_5, %c0_6] : memref<8x32xf32, #tpu.memory_space<vmem>>, vector<8x32xf32>
      %cst = arith.constant dense<0.000000e+00> : vector<8x8xf32>
      %11 = tpu.matmul %9, %10, %cst {dimension_numbers = #tpu.dot_dimension_numbers<[1], [1], [0], [0], [0, 0, 1, 0], [], []>} : vector<8x32xf32>, vector<8x32xf32>, vector<8x8xf32> -> vector<8x8xf32>
      %c0_7 = arith.constant 0 : index
      %c0_8 = arith.constant 0 : index
      %12 = vector.load %arg5[%c0_7, %c0_8] : memref<8x1xf32, #tpu.memory_space<vmem>>, vector<8x1xf32>
      %c0_9 = arith.constant 0 : index
      %c0_10 = arith.constant 0 : index
      %13 = vector.load %arg6[%c0_9, %c0_10] : memref<1x8xf32, #tpu.memory_space<vmem>>, vector<1x8xf32>
      %14 = vector.broadcast %12 : vector<8x1xf32> to vector<8x8xf32>
      %15 = vector.broadcast %13 : vector<1x8xf32> to vector<8x8xf32>
      %16 = arith.addf %14, %15 : vector<8x8xf32>
      %cst_11 = arith.constant 2.000000e+00 : f32
      %17 = vector.broadcast %cst_11 : f32 to vector<8x8xf32>
      %18 = arith.mulf %17, %11 : vector<8x8xf32>
      %19 = arith.subf %16, %18 : vector<8x8xf32>
      %cst_12 = arith.constant 0.000000e+00 : f32
      %20 = vector.broadcast %cst_12 : f32 to vector<8x8xf32>
      %21 = arith.maximumf %19, %20 : vector<8x8xf32>
      %c0_13 = arith.constant 0 : index
      %c0_14 = arith.constant 0 : index
      %22 = vector.load %arg7[%c0_13, %c0_14] : memref<8x1xi32, #tpu.memory_space<vmem>>, vector<8x1xi32>
      %c0_15 = arith.constant 0 : index
      %c0_16 = arith.constant 0 : index
      %23 = vector.load %arg8[%c0_15, %c0_16] : memref<1x8xi32, #tpu.memory_space<vmem>>, vector<1x8xi32>
      %24 = vector.broadcast %22 : vector<8x1xi32> to vector<8x8xi32>
      %25 = vector.broadcast %23 : vector<1x8xi32> to vector<8x8xi32>
      %26 = arith.cmpi eq, %24, %25 : vector<8x8xi32>
      %cst_17 = arith.constant 1.000000e+00 : f32
      %27 = vector.broadcast %cst_17 : f32 to vector<8x8xf32>
      %28 = arith.select %26, %21, %27 : vector<8x8xi1>, vector<8x8xf32>
      %29 = math.rsqrt %28 : vector<8x8xf32>
      %30 = arith.extui %26 : vector<8x8xi1> to vector<8x8xi32>
      %31 = arith.sitofp %30 : vector<8x8xi32> to vector<8x8xf32>
      %32 = arith.mulf %29, %31 : vector<8x8xf32>
      %33 = arith.cmpi sgt, %arg1, %arg0 : i32
      %34 = arith.extui %33 : i1 to i32
      %c0_i32_18 = arith.constant 0 : i32
      %35 = arith.cmpi ne, %34, %c0_i32_18 : i32
      scf.if %35 {
        %c0_20 = arith.constant 0 : index
        %c0_21 = arith.constant 0 : index
        %39 = vector.load %arg12[%c0_20, %c0_21] : memref<8x1xf32, #tpu.memory_space<vmem>>, vector<8x1xf32>
        %cst_22 = arith.constant dense<0.000000e+00> : vector<8xf32>
        %40 = vector.multi_reduction <add>, %32, %cst_22 [1] : vector<8x8xf32> to vector<8xf32>
        %41 = vector.shape_cast %40 : vector<8xf32> to vector<8x1xf32>
        %cst_23 = arith.constant 2.000000e+00 : f32
        %42 = vector.broadcast %cst_23 : f32 to vector<8x1xf32>
        %43 = arith.mulf %42, %41 : vector<8x1xf32>
        %44 = arith.addf %39, %43 : vector<8x1xf32>
        %c0_24 = arith.constant 0 : index
        %c0_25 = arith.constant 0 : index
        %45 = vector.load %arg12[%c0_24, %c0_25] : memref<8x1xf32, #tpu.memory_space<vmem>>, vector<8x1xf32>
        tpu.vector_store %arg12[%c0_24, %c0_25], %44 {strides = array<i32>} : memref<8x1xf32, #tpu.memory_space<vmem>>, vector<8x1xf32>,
      } else {
      }
      %36 = arith.cmpi eq, %arg1, %arg0 : i32
      %37 = arith.extui %36 : i1 to i32
      %c0_i32_19 = arith.constant 0 : i32
      %38 = arith.cmpi ne, %37, %c0_i32_19 : i32
      scf.if %38 {
        %39 = tpu.iota {dimensions = array<i32: 0>} : vector<8x8xi32>
        %40 = tpu.iota {dimensions = array<i32: 1>} : vector<8x8xi32>
        %41 = arith.cmpi eq, %39, %40 : vector<8x8xi32>
        %cst_20 = arith.constant 0.000000e+00 : f32
        %42 = vector.broadcast %cst_20 : f32 to vector<8x8xf32>
        %43 = arith.select %41, %42, %32 : vector<8x8xi1>, vector<8x8xf32>
        %c0_21 = arith.constant 0 : index
        %c0_22 = arith.constant 0 : index
        %44 = vector.load %arg12[%c0_21, %c0_22] : memref<8x1xf32, #tpu.memory_space<vmem>>, vector<8x1xf32>
        %cst_23 = arith.constant dense<0.000000e+00> : vector<8xf32>
        %45 = vector.multi_reduction <add>, %43, %cst_23 [1] : vector<8x8xf32> to vector<8xf32>
        %46 = vector.shape_cast %45 : vector<8xf32> to vector<8x1xf32>
        %47 = arith.addf %44, %46 : vector<8x1xf32>
        %c0_24 = arith.constant 0 : index
        %c0_25 = arith.constant 0 : index
        %48 = vector.load %arg12[%c0_24, %c0_25] : memref<8x1xf32, #tpu.memory_space<vmem>>, vector<8x1xf32>
        tpu.vector_store %arg12[%c0_24, %c0_25], %47 {strides = array<i32>} : memref<8x1xf32, #tpu.memory_space<vmem>>, vector<8x1xf32>,
      } else {
      }
    } else {
    }
    %c0_i32_2 = arith.constant 0 : i32
    %6 = arith.cmpi eq, %arg1, %c0_i32_2 : i32
    %7 = arith.extui %6 : i1 to i32
    %c0_i32_3 = arith.constant 0 : i32
    %8 = arith.cmpi ne, %7, %c0_i32_3 : i32
    scf.if %8 {
      %c0 = arith.constant 0 : index
      %c0_4 = arith.constant 0 : index
      %9 = vector.load %arg12[%c0, %c0_4] : memref<8x1xf32, #tpu.memory_space<vmem>>, vector<8x1xf32>
      %c0_5 = arith.constant 0 : index
      %c0_6 = arith.constant 0 : index
      %10 = vector.load %arg9[%c0_5, %c0_6] : memref<8x1xf32, #tpu.memory_space<vmem>>, vector<8x1xf32>
      %11 = arith.mulf %9, %10 : vector<8x1xf32>
      %12 = vector.shape_cast %11 : vector<8x1xf32> to vector<1x8x1xf32>
      %cst = arith.constant dense<0.000000e+00> : vector<1xf32>
      %13 = vector.multi_reduction <add>, %12, %cst [1, 2] : vector<1x8x1xf32> to vector<1xf32>
      %14 = vector.shape_cast %13 : vector<1xf32> to vector<1x1x1xf32>
      %15 = vector.extract %14[0, 0, 0] : f32 from vector<1x1x1xf32>
      %c0_7 = arith.constant 0 : index
      %c0_8 = arith.constant 0 : index
      %16 = vector.load %arg10[%c0_7, %c0_8] : memref<8x128xf32, #tpu.memory_space<vmem>>, vector<8x128xf32>
      %cst_9 = arith.constant dense<0xFF800000> : vector<8xf32>
      %17 = vector.multi_reduction <maximumf>, %16, %cst_9 [1] : vector<8x128xf32> to vector<8xf32>
      %18 = vector.shape_cast %17 : vector<8xf32> to vector<8x1xf32>
      %19 = vector.broadcast %18 : vector<8x1xf32> to vector<8x128xf32>
      %20 = arith.subf %16, %19 : vector<8x128xf32>
      %21 = math.exp %20 : vector<8x128xf32>
      %cst_10 = arith.constant dense<0.000000e+00> : vector<8xf32>
      %22 = vector.multi_reduction <add>, %21, %cst_10 [1] : vector<8x128xf32> to vector<8xf32>
      %23 = vector.shape_cast %22 : vector<8xf32> to vector<8x1xf32>
      %24 = math.log %23 : vector<8x1xf32>
      %25 = arith.addf %18, %24 : vector<8x1xf32>
      %26 = tpu.iota {dimensions = array<i32: 1>} : vector<8x128xi32>
      %c0_11 = arith.constant 0 : index
      %c0_12 = arith.constant 0 : index
      %27 = vector.load %arg7[%c0_11, %c0_12] : memref<8x1xi32, #tpu.memory_space<vmem>>, vector<8x1xi32>
      %28 = vector.broadcast %27 : vector<8x1xi32> to vector<8x128xi32>
      %29 = arith.cmpi eq, %26, %28 : vector<8x128xi32>
      %30 = arith.extui %29 : vector<8x128xi1> to vector<8x128xi32>
      %31 = arith.sitofp %30 : vector<8x128xi32> to vector<8x128xf32>
      %32 = arith.mulf %16, %31 : vector<8x128xf32>
      %cst_13 = arith.constant dense<0.000000e+00> : vector<8xf32>
      %33 = vector.multi_reduction <add>, %32, %cst_13 [1] : vector<8x128xf32> to vector<8xf32>
      %34 = vector.shape_cast %33 : vector<8xf32> to vector<8x1xf32>
      %c0_14 = arith.constant 0 : index
      %c0_15 = arith.constant 0 : index
      %35 = vector.load %arg7[%c0_14, %c0_15] : memref<8x1xi32, #tpu.memory_space<vmem>>, vector<8x1xi32>
      %c0_i32_16 = arith.constant 0 : i32
      %36 = vector.broadcast %c0_i32_16 : i32 to vector<8x1xi32>
      %37 = arith.cmpi sge, %35, %36 : vector<8x1xi32>
      %38 = arith.extui %37 : vector<8x1xi1> to vector<8x1xi32>
      %39 = arith.sitofp %38 : vector<8x1xi32> to vector<8x1xf32>
      %40 = arith.subf %25, %34 : vector<8x1xf32>
      %41 = arith.mulf %40, %39 : vector<8x1xf32>
      %42 = vector.shape_cast %41 : vector<8x1xf32> to vector<1x8x1xf32>
      %cst_17 = arith.constant dense<0.000000e+00> : vector<1xf32>
      %43 = vector.multi_reduction <add>, %42, %cst_17 [1, 2] : vector<1x8x1xf32> to vector<1xf32>
      %44 = vector.shape_cast %43 : vector<1xf32> to vector<1x1x1xf32>
      %45 = vector.extract %44[0, 0, 0] : f32 from vector<1x1x1xf32>
      %cst_18 = arith.constant 8.000000e+00 : f32
      %46 = arith.divf %45, %cst_18 : f32
      %c0_19 = arith.constant 0 : index
      %c0_20 = arith.constant 0 : index
      %47 = memref.load %arg2[%c0_19, %c0_20] : memref<1x1xf32, #tpu.memory_space<smem>>
      %48 = arith.mulf %47, %15 : f32
      %49 = arith.addf %48, %46 : f32
      %50 = tpu.iota {dimensions = array<i32: 0>} : vector<8x128xi32>
      %51 = tpu.iota {dimensions = array<i32: 1>} : vector<8x128xi32>
      %c0_i32_21 = arith.constant 0 : i32
      %52 = vector.broadcast %c0_i32_21 : i32 to vector<8x128xi32>
      %53 = arith.cmpi eq, %50, %52 : vector<8x128xi32>
      %c0_i32_22 = arith.constant 0 : i32
      %54 = vector.broadcast %c0_i32_22 : i32 to vector<8x128xi32>
      %55 = arith.cmpi eq, %51, %54 : vector<8x128xi32>
      %56 = arith.andi %53, %55 : vector<8x128xi1>
      %cst_23 = arith.constant 0.000000e+00 : f32
      %57 = vector.broadcast %49 : f32 to vector<8x128xf32>
      %58 = vector.broadcast %cst_23 : f32 to vector<8x128xf32>
      %59 = arith.select %56, %57, %58 : vector<8x128xi1>, vector<8x128xf32>
      %c0_24 = arith.constant 0 : index
      %c0_25 = arith.constant 0 : index
      %60 = vector.load %arg11[%c0_24, %c0_25] : memref<8x128xf32, #tpu.memory_space<vmem>>, vector<8x128xf32>
      tpu.vector_store %arg11[%c0_24, %c0_25], %59 {strides = array<i32>} : memref<8x128xf32, #tpu.memory_space<vmem>>, vector<8x128xf32>,
    } else {
    }
    return
  }
  func.func @transform_0(%arg0: i32, %arg1: i32) -> (i32, i32) {
    %c0_i32 = arith.constant 0 : i32
    %c0_i32_0 = arith.constant 0 : i32
    %c0_i32_1 = arith.constant 0 : i32
    return %c0_i32, %c0_i32_0 : i32, i32
  }
  func.func @transform_1(%arg0: i32, %arg1: i32) -> (i32, i32) {
    %c0_i32 = arith.constant 0 : i32
    %c0_i32_0 = arith.constant 0 : i32
    return %arg0, %c0_i32 : i32, i32
  }
  func.func @transform_2(%arg0: i32, %arg1: i32) -> (i32, i32) {
    %c0_i32 = arith.constant 0 : i32
    %c0_i32_0 = arith.constant 0 : i32
    return %arg1, %c0_i32 : i32, i32
  }
  func.func @transform_3(%arg0: i32, %arg1: i32) -> (i32, i32) {
    %c0_i32 = arith.constant 0 : i32
    %c0_i32_0 = arith.constant 0 : i32
    return %arg0, %c0_i32 : i32, i32
  }
  func.func @transform_4(%arg0: i32, %arg1: i32) -> (i32, i32) {
    %c0_i32 = arith.constant 0 : i32
    %c0_i32_0 = arith.constant 0 : i32
    return %c0_i32, %arg1 : i32, i32
  }
  func.func @transform_5(%arg0: i32, %arg1: i32) -> (i32, i32) {
    %c0_i32 = arith.constant 0 : i32
    %c0_i32_0 = arith.constant 0 : i32
    return %arg0, %c0_i32 : i32, i32
  }
  func.func @transform_6(%arg0: i32, %arg1: i32) -> (i32, i32) {
    %c0_i32 = arith.constant 0 : i32
    %c0_i32_0 = arith.constant 0 : i32
    return %c0_i32, %arg1 : i32, i32
  }
  func.func @transform_7(%arg0: i32, %arg1: i32) -> (i32, i32) {
    %c0_i32 = arith.constant 0 : i32
    %c0_i32_0 = arith.constant 0 : i32
    return %arg0, %c0_i32 : i32, i32
  }
  func.func @transform_8(%arg0: i32, %arg1: i32) -> (i32, i32) {
    %c0_i32 = arith.constant 0 : i32
    %c0_i32_0 = arith.constant 0 : i32
    return %arg0, %c0_i32 : i32, i32
  }
  func.func @transform_9(%arg0: i32, %arg1: i32) -> (i32, i32) {
    %c0_i32 = arith.constant 0 : i32
    %c0_i32_0 = arith.constant 0 : i32
    return %arg0, %c0_i32 : i32, i32
  }
}

</mosaic_0001>

<llo_original>
// kernel: tpu_custom_call.1
$region0: #{tpu_custom_call.1}
  #allocation0 [shape = 'u32[]', space=smem, size = 0x4, offset = 0x4, fixed_abs, tag = 'smem constant byte address 0x4 - core index']
  #allocation1 [shape = 'u32[144,128]{1,0:T(1,128)}', space=vmem, size = 0x12000, scoped, tag = 'internal scratch']
  #allocation2 [shape = 'f32[8,1]{1,0:T(8,128)}', space=vmem, size = 0x1000, scoped, tag = 'scratch operand']
  #allocation3 [shape = 'f32[1,1]{1,0:T(1,128)S(6)}', space=smem, size = 0x200, scoped, tag = 'scoped memory for tpu_custom_call.1']
  %s0 = inlined_call_operand.<no memory space> [shape: f32[1,1], index: 0, kind: input, shape index: {}]
  %s1 = inlined_call_operand.vmem [shape: f32[8,32], index: 1, kind: input, shape index: {}]
  %s2 = inlined_call_operand.vmem [shape: f32[8,32], index: 2, kind: input, shape index: {}]
  %s3 = inlined_call_operand.vmem [shape: f32[8,1], index: 3, kind: input, shape index: {}]
  %s4 = inlined_call_operand.vmem [shape: f32[1,8], index: 4, kind: input, shape index: {}]
  %s5 = inlined_call_operand.vmem [shape: s32[8,1], index: 5, kind: input, shape index: {}]
  %s6 = inlined_call_operand.vmem [shape: s32[1,8], index: 6, kind: input, shape index: {}]
  %s7 = inlined_call_operand.vmem [shape: f32[8,1], index: 7, kind: input, shape index: {}]
  %s8 = inlined_call_operand.vmem [shape: f32[8,128], index: 8, kind: input, shape index: {}]
  %s9 = inlined_call_operand.hbm [shape: f32[8,128], index: 9, kind: output, shape index: {}]
  %s10 = sld [smem:[#allocation0]]
  $region66: #{tpu_custom_call.1} parent=0
    _
  %s12 = ssub.s32 1, %s10
  %s13 = scalar_select 0, %s12, %s10
  %14 = sst [smem:[#allocation3]] %s0
  $region1: #{tpu_custom_call.1} parent=0
    #allocation4 [shape = 'u8[4096]{0}', space=vmem, size = 0x1000, scoped, tag = 'output window, operand 0, single buffered']
    #allocation5 [shape = 's32[1]{0}', space=sflag, size = 0x4, scoped, tag = 'scoped memory for tpu_custom_call.1']
    %15 = vsyncpa [#allocation5], 0
    // Predicated region
    $region2: #{tpu_custom_call.1} parent=1 // pred_check
      _
    $region3: #{tpu_custom_call.1} parent=1 // pred_check_branch
      %17 = sbr.rel (0) target = $region5
    $region4: #{tpu_custom_call.1} parent=1 // pred_region
      _
    $region5: #{tpu_custom_call.1} parent=1 // pred_fallthru
      _
    // Predicated region
    $region6: #{tpu_custom_call.1} parent=1 // pred_check
      _
    $region7: #{tpu_custom_call.1} parent=1 // pred_check_branch
      %19 = sbr.rel (0) target = $region9
    $region8: #{tpu_custom_call.1} parent=1 // pred_region
      _
    $region9: #{tpu_custom_call.1} parent=1 // pred_fallthru
      _
    // Predicated region
    $region10: #{tpu_custom_call.1} parent=1 // pred_check
      _
    $region11: #{tpu_custom_call.1} parent=1 // pred_check_branch
      %21 = sbr.rel (0) target = $region13
    $region12: #{tpu_custom_call.1} parent=1 // pred_region
      _
    $region13: #{tpu_custom_call.1} parent=1 // pred_fallthru
      _
    // Predicated region
    $region14: #{tpu_custom_call.1} parent=1 // pred_check
      _
    $region15: #{tpu_custom_call.1} parent=1 // pred_check_branch
      %23 = sbr.rel (0) target = $region17
    $region16: #{tpu_custom_call.1} parent=1 // pred_region
      _
    $region17: #{tpu_custom_call.1} parent=1 // pred_fallthru
      _
    // Predicated region
    $region18: #{tpu_custom_call.1} parent=1 // pred_check
      _
    $region19: #{tpu_custom_call.1} parent=1 // pred_check_branch
      %25 = sbr.rel (0) target = $region21
    $region20: #{tpu_custom_call.1} parent=1 // pred_region
      _
    $region21: #{tpu_custom_call.1} parent=1 // pred_fallthru
      _
    // Predicated region
    $region22: #{tpu_custom_call.1} parent=1 // pred_check
      _
    $region23: #{tpu_custom_call.1} parent=1 // pred_check_branch
      %27 = sbr.rel (0) target = $region25
    $region24: #{tpu_custom_call.1} parent=1 // pred_region
      _
    $region25: #{tpu_custom_call.1} parent=1 // pred_fallthru
      _
    // Predicated region
    $region26: #{tpu_custom_call.1} parent=1 // pred_check
      _
    $region27: #{tpu_custom_call.1} parent=1 // pred_check_branch
      %29 = sbr.rel (0) target = $region29
    $region28: #{tpu_custom_call.1} parent=1 // pred_region
      _
    $region29: #{tpu_custom_call.1} parent=1 // pred_fallthru
      _
    // Predicated region
    $region30: #{tpu_custom_call.1} parent=1 // pred_check
      _
    $region31: #{tpu_custom_call.1} parent=1 // pred_check_branch
      %31 = sbr.rel (0) target = $region33
    $region32: #{tpu_custom_call.1} parent=1 // pred_region
      _
    $region33: #{tpu_custom_call.1} parent=1 // pred_fallthru
      _
    // Predicated region
    $region34: #{tpu_custom_call.1} parent=1 // pred_check
      _
    $region35: #{tpu_custom_call.1} parent=1 // pred_check_branch
      %33 = sbr.rel (0) target = $region37
    $region36: #{tpu_custom_call.1} parent=1 // pred_region
      _
    $region37: #{tpu_custom_call.1} parent=1 // pred_fallthru
      _
    %p34 = scmp.eq.s32.totalorder 0, 0
    // Predicated region
    $region38: #{tpu_custom_call.1} parent=1 // pred_check
      %p35 = pneg %p34
    $region39: #{tpu_custom_call.1} parent=1 // pred_check_branch
      %37 = sbr.rel (%p35) target = $region41
    $region40: #{tpu_custom_call.1} parent=1 // pred_region
      %vm38 = vcmask 7168
      %39 = vst.msk [vmem:[#allocation2] sm:$0xff] %vm38, 0.0
    $region41: #{tpu_custom_call.1} parent=1 // pred_fallthru
      _
    %p40 = scmp.ge.s32.totalorder 0, 0
    // Predicated region
    $region42: #{tpu_custom_call.1} parent=1 // pred_check
      %p41 = pneg %p40
    $region43: #{tpu_custom_call.1} parent=1 // pred_check_branch
      %43 = sbr.rel (%p41) target = $region45
    $region44: #{tpu_custom_call.1} parent=1 // pred_region
      %v44 = vld [vmem:[%s1] sm:$0xff]
      %v45 = vld [vmem:[%s2] sm:$0xff]
      %vm46 = vcmask 261120
      %v48 = vsel %vm46, %v44, 0
      %v51 = vsel %vm46, %v45, 0
      %53 = vmatprep.subr.mxu0 0.0
      %54 = vmatpush1.xpose.msra.mxu0 %v51
      %55 = vmatprep.subr.mxu0 0.0
      %56 = vmatpush1.xpose.msra.mxu0 0.0
      %57 = vmatprep.subr.mxu0 0.0
      %58 = vmatpush1.xpose.msra.mxu0 0.0
      %59 = vmatprep.subr.mxu0 0.0
      %60 = vmatpush1.xpose.msra.mxu0 0.0
      %61 = vmatprep.subr.mxu0 0.0
      %62 = vmatpush1.xpose.msra.mxu0 0.0
      %63 = vmatprep.subr.mxu0 0.0
      %64 = vmatpush1.xpose.msra.mxu0 0.0
      %65 = vmatprep.subr.mxu0 0.0
      %66 = vmatpush1.xpose.msra.mxu0 0.0
      %67 = vmatprep.subr.mxu0 0.0
      %68 = vmatpush1.xpose.msra.mxu0 0.0
      %69 = vmatprep.subr.mxu0 0.0
      %70 = vmatpush1.xpose.msra.mxu0 0.0
      %71 = vmatprep.subr.mxu0 0.0
      %72 = vmatpush1.xpose.msra.mxu0 0.0
      %73 = vmatprep.subr.mxu0 0.0
      %74 = vmatpush1.xpose.msra.mxu0 0.0
      %75 = vmatprep.subr.mxu0 0.0
      %76 = vmatpush1.xpose.msra.mxu0 0.0
      %77 = vmatprep.subr.mxu0 0.0
      %78 = vmatpush1.xpose.msra.mxu0 0.0
      %79 = vmatprep.subr.mxu0 0.0
      %80 = vmatpush1.xpose.msra.mxu0 0.0
      %81 = vmatprep.subr.mxu0 0.0
      %82 = vmatpush1.xpose.msra.mxu0 0.0
      %83 = vmatprep.subr.mxu0 0.0
      %84 = vmatpush1.xpose.msra.mxu0 0.0
      %85 = vmatprep.subr.mxu0 0.0
      %86 = vmatpush1.xpose.msra.mxu0 0.0
      %87 = vmatprep.subr.mxu0 0.0
      %88 = vmatpush1.xpose.msra.mxu0 0.0
      %89 = vmatprep.subr.mxu0 0.0
      %90 = vmatpush1.xpose.msra.mxu0 0.0
      %91 = vmatprep.subr.mxu0 0.0
      %92 = vmatpush1.xpose.msra.mxu0 0.0
      %93 = vmatprep.subr.mxu0 0.0
      %94 = vmatpush1.xpose.msra.mxu0 0.0
      %95 = vmatprep.subr.mxu0 0.0
      %96 = vmatpush1.xpose.msra.mxu0 0.0
      %97 = vmatprep.subr.mxu0 0.0
      %98 = vmatpush1.xpose.msra.mxu0 0.0
      %99 = vmatprep.subr.mxu0 0.0
      %100 = vmatpush1.xpose.msra.mxu0 0.0
      %101 = vmatprep.subr.mxu0 0.0
      %102 = vmatpush1.xpose.msra.mxu0 0.0
      %103 = vmatprep.subr.mxu0 0.0
      %104 = vmatpush1.xpose.msra.mxu0 0.0
      %105 = vmatprep.subr.mxu0 0.0
      %106 = vmatpush1.xpose.msra.mxu0 0.0
      %107 = vmatprep.subr.mxu0 0.0
      %108 = vmatpush1.xpose.msra.mxu0 0.0
      %109 = vmatprep.subr.mxu0 0.0
      %110 = vmatpush1.xpose.msra.mxu0 0.0
      %111 = vmatprep.subr.mxu0 0.0
      %112 = vmatpush1.xpose.msra.mxu0 0.0
      %113 = vmatprep.subr.mxu0 0.0
      %114 = vmatpush1.xpose.msra.mxu0 0.0
      %115 = vmatprep.subr.mxu0 0.0
      %116 = vmatpush1.xpose.msra.mxu0 0.0
      %117 = vmatprep.mubr.f32.mxu0 0.0
      %118 = vmatmul.mubr.f32.gmra.mrb[0].mxu0 %v48
      %v119 = vpop.f32.mrb[0].mxu0
      %v120 = vadd.f32 0.0, %v119
      %v121 = vpop.f32.mrb[0].mxu0
      %122 = vdwg.mxu0
      %v123 = vld [vmem:[%s3] sm:$0xff]
      %v124 = vld [vmem:[%s4] sm:$0x1]
      %126 = vset.pattern.permute.xlu0 0
      %127 = vperm.xlu0 %126, %v123
      %v128 = vpop.permute.xlu0 %127
      %v131 = vlaneseq
      %v132 = vshrl.u32 %v131, 7
      %v133 = vsub.s32 0, %v132
      %v134 = vrot.slane %v124, %v133
      %v136 = vadd.f32 %v128, %v134
      %v137 = vmul.f32 %v120, 2.0
      %v138 = vsub.f32 %v136, %v137
      %v139 = vmax.f32 %v138, 0.0
      %v140 = vld [vmem:[%s5] sm:$0xff]
      %v141 = vld [vmem:[%s6] sm:$0x1]
      %142 = vset.pattern.permute.xlu0 0
      %143 = vperm.xlu0 %142, %v140
      %v144 = vpop.permute.xlu0 %143
      %v145 = vlaneseq
      %v146 = vshrl.u32 %v145, 7
      %v147 = vsub.s32 0, %v146
      %v148 = vrot.slane %v141, %v147
      %vm149 = vcmp.eq.s32.totalorder %v144, %v148
      %v150 = vsel %vm149, %v139, 1.0
      %v151 = vrsqrt.pop %v150
      %v152 = vsel %vm149, 1, 0
      %v153 = vcvt.s32.f32 %v152
      %v154 = vmul.f32 %v151, %v153
      %p155 = scmp.gt.s32.totalorder 0, 0
      // Predicated region
      $region46: #{tpu_custom_call.1} parent=44 // pred_check
        %p156 = pneg %p155
      $region47: #{tpu_custom_call.1} parent=44 // pred_check_branch
        %158 = sbr.rel (%p156) target = $region49
      $region48: #{tpu_custom_call.1} parent=44 // pred_region
        %v159 = vld [vmem:[#allocation2] sm:$0xff]
        %vm160 = vcmask 64512
        %v161 = vsel %vm160, %v154, 0.0
        %162 = vadd.xlane.f32.xlu0 %v161
        %v163 = vpop.xlane.xlu0 %162
        %v164 = vmul.f32 %v163, 2.0
        %v165 = vadd.f32 %v159, %v164
        %vm166 = vcmask 7168
        %167 = vst.msk [vmem:[#allocation2] sm:$0xff] %vm166, %v165
      $region49: #{tpu_custom_call.1} parent=44 // pred_fallthru
        _
      %p168 = scmp.eq.s32.totalorder 0, 0
      // Predicated region
      $region50: #{tpu_custom_call.1} parent=44 // pred_check
        %p169 = pneg %p168
      $region51: #{tpu_custom_call.1} parent=44 // pred_check_branch
        %171 = sbr.rel (%p169) target = $region53
      $region52: #{tpu_custom_call.1} parent=44 // pred_region
        %v172 = vlaneseq
        %v173 = vshrl.u32 %v172, 7
        %v174 = vlaneseq
        %v175 = vand.u32 %v174, 127
        %vm176 = vcmp.eq.s32.totalorder %v173, %v175
        %v177 = vsel %vm176, 0.0, %v154
        %v178 = vld [vmem:[#allocation2] sm:$0xff]
        %vm179 = vcmask 64512
        %v180 = vsel %vm179, %v177, 0.0
        %181 = vadd.xlane.f32.xlu0 %v180
        %v182 = vpop.xlane.xlu0 %181
        %v183 = vadd.f32 %v178, %v182
        %vm184 = vcmask 7168
        %185 = vst.msk [vmem:[#allocation2] sm:$0xff] %vm184, %v183
      $region53: #{tpu_custom_call.1} parent=44 // pred_fallthru
        _
    $region45: #{tpu_custom_call.1} parent=1 // pred_fallthru
      _
    // Predicated region
    $region54: #{tpu_custom_call.1} parent=1 // pred_check
      %p186 = pneg %p34
    $region55: #{tpu_custom_call.1} parent=1 // pred_check_branch
      %188 = sbr.rel (%p186) target = $region57
    $region56: #{tpu_custom_call.1} parent=1 // pred_region
      %v189 = vld [vmem:[#allocation2] sm:$0xff]
      %v190 = vld [vmem:[%s7] sm:$0xff]
      %v191 = vmul.f32 %v189, %v190
      %vm192 = vcmask 7168
      %v193 = vsel %vm192, %v191, 0.0
      %194 = vadd.xlane.f32.xlu0 %v193
      %v195 = vpop.xlane.xlu0 %194
      %v196 = vrot.slane %v195, 4
      %v197 = vadd.f32 %v195, %v196
      %v198 = vrot.slane %v197, 2
      %v199 = vadd.f32 %v197, %v198
      %v200 = vrot.slane %v199, 1
      %v201 = vadd.f32 %v199, %v200
      %s202 = vtos %v201
      %v203 = vld [vmem:[%s8] sm:$0xff]
      %204 = vmax.xlane.f32.xlu0 %v203
      %v205 = vpop.xlane.xlu0 %204
      %v206 = vsub.f32 %v203, %v205
      %v207 = vmul.f32 %v206, 1.442695
      %v208 = vpow.pop %v207
      %209 = vadd.xlane.f32.xlu0 %v208
      %v210 = vpop.xlane.xlu0 %209
      %v211 = vlog2.pop %v210
      %v212 = vmul.f32 %v211, 0.6931472
      %v213 = vadd.f32 %v205, %v212
      %v214 = vlaneseq
      %v215 = vand.u32 %v214, 127
      %v216 = vld [vmem:[%s5] sm:$0xff]
      %217 = vset.pattern.permute.xlu0 0
      %218 = vperm.xlu0 %217, %v216
      %v219 = vpop.permute.xlu0 %218
      %vm220 = vcmp.eq.s32.totalorder %v215, %v219
      %v221 = vsel %vm220, 1, 0
      %v222 = vcvt.s32.f32 %v221
      %v223 = vmul.f32 %v203, %v222
      %224 = vadd.xlane.f32.xlu0 %v223
      %v225 = vpop.xlane.xlu0 %224
      %vm226 = vcmp.ge.s32.totalorder %v216, 0
      %v227 = vsel %vm226, 1, 0
      %v228 = vcvt.s32.f32 %v227
      %v229 = vsub.f32 %v213, %v225
      %v230 = vmul.f32 %v229, %v228
      %v231 = vsel %vm192, %v230, 0.0
      %232 = vadd.xlane.f32.xlu0 %v231
      %v233 = vpop.xlane.xlu0 %232
      %v234 = vrot.slane %v233, 4
      %v235 = vadd.f32 %v233, %v234
      %v236 = vrot.slane %v235, 2
      %v237 = vadd.f32 %v235, %v236
      %v238 = vrot.slane %v237, 1
      %v239 = vadd.f32 %v237, %v238
      %s240 = vtos %v239
      %v241 = vrcp.pop 8.0
      %s242 = vtos %v241
      %s243 = smul.f32 %s240, %s242
      %s244 = sld [smem:[#allocation3]]
      %s245 = smul.f32 %s244, %s202
      %s246 = sadd.f32 %s245, %s243
      %v247 = vlaneseq
      %v248 = vshrl.u32 %v247, 7
      %vm249 = vcmp.eq.s32.totalorder %v248, 0
      %vm250 = vcmp.eq.s32.totalorder %v215, 0
      %vm251 = vmand %vm249, %vm250
      %v252 = vstv %s246
      %v253 = vsel %vm251, %v252, 0.0
      %254 = vst [vmem:[#allocation4] sm:$0xff] %v253
    $region57: #{tpu_custom_call.1} parent=1 // pred_fallthru
      _
    // Predicated region
    $region58: #{tpu_custom_call.1} parent=1 // pred_check
      _
    $region59: #{tpu_custom_call.1} parent=1 // pred_check_branch
      %256 = sbr.rel (0) target = $region61
    $region60: #{tpu_custom_call.1} parent=1 // pred_region
      %s258 = ssub.s32 128, 128
      %259 = vsyncadd [#allocation5], %s258
      %s261 = sshll.u32 [#allocation4], 4
      %s262 = int_to_ptr.vmem [resolvable:$true] %s261
      %264 = dma.vmem_to_hbm [thread:$0]  %s262, 128, %s9, [#allocation5]
    $region61: #{tpu_custom_call.1} parent=1 // pred_fallthru
      _
    // Predicated region
    $region62: #{tpu_custom_call.1} parent=1 // pred_check
      _
    $region63: #{tpu_custom_call.1} parent=1 // pred_check_branch
      %266 = sbr.rel (0) target = $region65
    $region64: #{tpu_custom_call.1} parent=1 // pred_region
      %267 = dma.done [#allocation5], 128
    $region65: #{tpu_custom_call.1} parent=1 // pred_fallthru
      _
    %268 = vsyncpa [#allocation5], 1

</llo_original>
